<compile_context>
chip_gen: v7x
topology: tpu7x:2x2x1
jax: 0.10.0
libtpu: 0.0.40
codegen_flags: <defaults>
</compile_context>

<pallas_src>
import jax
import jax.numpy as jnp
import numpy as np
from jax import lax
from jax.experimental import pallas as pl
from jax.experimental.pallas import tpu as pltpu


def _make_convbank_kernel(K, Cin, Cout, Bt, T_tile, num_t_tiles):
    """Build the kernel closure for static (K, Cin, Cout, Bt, T_tile, num_t_tiles)."""

    def kernel(x_ref, w_ref, b_ref, o_ref):
        # x_ref: (Bt, Cin, L)          full-length input slab for this batch tile (NCL)
        # w_ref: (Cout, K*Cin)         packed bank weights (zero-padded taps)
        # b_ref: (Cout, 1)             concatenated biases
        # o_ref: (Bt, Cout, T_tile)    output tile (NCL)
        if num_t_tiles == 1:
            start = 0                                             # static slices
        else:
            start = pl.multiple_of(pl.program_id(1) * T_tile, T_tile)

        w = w_ref[...]                                            # (Cout, K*Cin)

        # im2col: rows k*Cin + ci  <->  x[ci, start + k + tau], tau in [0, T_tile)
        cols = []
        for bi in range(Bt):                                      # Bt is small & static
            if num_t_tiles == 1:
                taps = [x_ref[bi, :, k:k + T_tile] for k in range(K)]
            else:
                taps = [x_ref[bi, :, pl.ds(start + k, T_tile)] for k in range(K)]
            cols.append(jnp.concatenate(taps, axis=0))            # (K*Cin, T_tile)
        x2d = cols[0] if Bt == 1 else jnp.concatenate(cols, axis=1)   # (K*Cin, Bt*T_tile)

        # Single fused matmul: contraction dim K*Cin, f32 accumulation on the MXU.
        acc = jnp.dot(w, x2d, preferred_element_type=jnp.float32)     # (Cout, Bt*T_tile)
        acc = acc + b_ref[...]                                        # broadcast (Cout, 1)

        for bi in range(Bt):
            o_ref[bi] = acc[:, bi * T_tile:(bi + 1) * T_tile].astype(o_ref.dtype)

    return kernel


def conv_bank_forward(x_ncl, w_packed, b_packed, *, batch_tile=1, t_tile=None):
    """x_ncl: (B, Cin, L) -> (B, Cout_total, T_out). PyTorch NCL layout in and out."""
    B, Cin, L = x_ncl.shape
    Cout, KC = w_packed.shape
    K = KC // Cin
    T_out = L - K + 1

    Bt = batch_tile
    assert B % Bt == 0, "batch_tile must divide B"

    # T tiling: for small demos use a single full-extent tile (always legal); for long
    # sequences pick a 128-multiple tile that divides T_out.
    if t_tile is None or t_tile >= T_out:
        T_tile, num_t = T_out, 1
    else:
        assert T_out % t_tile == 0 and t_tile % 128 == 0
        T_tile, num_t = t_tile, T_out // t_tile

    b2 = b_packed.reshape(Cout, 1)
    kernel = _make_convbank_kernel(K, Cin, Cout, Bt, T_tile, num_t)

    # Explicit VMEM budget (double-buffered x/out blocks + resident weights/bias + slack).
    itemsize = jnp.dtype(x_ncl.dtype).itemsize
    vmem_bytes = (2 * Bt * (Cin * L + Cout * T_tile) * itemsize
                  + (Cout * KC + Cout) * 4 + (2 << 20))
    vmem_limit = int(min(max(vmem_bytes, 8 << 20), 48 << 20))

    out = pl.pallas_call(
        kernel,
        out_shape=jax.ShapeDtypeStruct((B, Cout, T_out), x_ncl.dtype),
        grid_spec=pltpu.PrefetchScalarGridSpec(
            num_scalar_prefetch=0,
            grid=(B // Bt, num_t),
            in_specs=[
                # x block index is constant along t -> fetched once per batch tile.
                pl.BlockSpec((Bt, Cin, L), lambda b, t: (b, 0, 0)),
                pl.BlockSpec((Cout, KC), lambda b, t: (0, 0)),
                pl.BlockSpec((Cout, 1), lambda b, t: (0, 0)),
            ],
            out_specs=pl.BlockSpec((Bt, Cout, T_tile), lambda b, t: (b, 0, t)),
        ),
        compiler_params=pltpu.CompilerParams(
            dimension_semantics=("parallel", "parallel"),
            vmem_limit_bytes=vmem_limit),
    )(x_ncl, w_packed, b2)
    return out


def init_bank_params(key, input_dim, num_channels):
    """Deterministic per-bank Conv1d params (PyTorch shapes):
       weight_d: (num_channels, input_dim, d), bias_d: (num_channels,), d = 1..num_channels."""
    weights, biases = [], []
    for d in range(1, num_channels + 1):
        key, kw, kb = jax.random.split(key, 3)
        bound = 1.0 / np.sqrt(input_dim * d)
        w = jax.random.uniform(kw, (num_channels, input_dim, d), jnp.float32, -bound, bound)
        b = jax.random.uniform(kb, (num_channels,), jnp.float32, -bound, bound)
        weights.append(w)
        biases.append(b)
    return weights, biases


def pack_bank_params(weights, biases, input_dim, num_channels):
    """Pack all banks into one fused-matmul weight W2d (Cout_total, K*Cin):
       W2d[co, k*Cin + ci] = w_bank[co_local, ci, k]  (zero for taps k >= d of that bank),
       plus the concatenated biases as (Cout_total, 1)."""
    K = num_channels
    Cout = num_channels * num_channels
    w2d = np.zeros((Cout, K * input_dim), np.float32)
    for idx, w in enumerate(weights):                       # bank idx has kernel size d = idx+1
        d = idx + 1
        rows = slice(idx * num_channels, (idx + 1) * num_channels)
        wa = np.asarray(w)                                  # (num_channels, input_dim, d)
        for k in range(d):
            w2d[rows, k * input_dim:(k + 1) * input_dim] = wa[:, :, k]
    b_packed = np.concatenate([np.asarray(b) for b in biases]).astype(np.float32).reshape(Cout, 1)
    return jnp.asarray(w2d), jnp.asarray(b_packed)


def reference_forward(x_ncl, weights, biases, T_out):
    """Pure-JAX reference: per-bank valid Conv1d, cropped to T_out, concat on channels."""
    outs = []
    for w, b in zip(weights, biases):
        y = lax.conv_general_dilated(
            x_ncl, w, window_strides=(1,), padding="VALID",
            dimension_numbers=("NCH", "OIH", "NCH"))
        y = y + b[None, :, None]
        outs.append(y[:, :, :T_out])
    return jnp.concatenate(outs, axis=1)


if __name__ == "__main__":
    B, input_dim, num_channels, L = 2, 8, 4, 16             # kernel sizes 1..4
    key = jax.random.PRNGKey(0)
    key, kx = jax.random.split(key)
    x = jax.random.normal(kx, (B, input_dim, L), jnp.float32)   # PyTorch NCL input

    weights, biases = init_bank_params(key, input_dim, num_channels)
    w_packed, b_packed = pack_bank_params(weights, biases, input_dim, num_channels)

    out = conv_bank_forward(x, w_packed, b_packed, batch_tile=1)
    out = jax.block_until_ready(out)

    T_out = L - num_channels + 1
    assert out.shape == (B, num_channels * num_channels, T_out), out.shape

    ref = reference_forward(x, weights, biases, T_out)
    if not np.allclose(np.asarray(out), np.asarray(ref), rtol=1e-4, atol=1e-4):
        raise AssertionError("Pallas conv bank does not match reference")

    print("KERNEL_OK")
</pallas_src>

<mosaic_0001>
module attributes {stable_mosaic.version = 11 : i64} {
  func.func @kernel(%arg0: i32, %arg1: i32, %arg2: memref<1x8x16xf32, #tpu.memory_space<vmem>>, %arg3: memref<16x32xf32, #tpu.memory_space<vmem>>, %arg4: memref<16x1xf32, #tpu.memory_space<vmem>>, %arg5: memref<1x16x13xf32, #tpu.memory_space<vmem>>) attributes {dimension_semantics = [#tpu.dimension_semantics<parallel>, #tpu.dimension_semantics<parallel>], iteration_bounds = array<i64: 2, 1>, scalar_prefetch = 0 : i64, scratch_operands = 0 : i64, tpu.core_type = #tpu.core_type<tc>, window_params = [{transform_indices = @transform_0, window_bounds = array<i64: 1, 8, 16>}, {pipeline_mode = #tpu.pipeline_mode<synchronous>, transform_indices = @transform_1, window_bounds = array<i64: 16, 32>}, {pipeline_mode = #tpu.pipeline_mode<synchronous>, transform_indices = @transform_2, window_bounds = array<i64: 16, 1>}, {transform_indices = @transform_3, window_bounds = array<i64: 1, 16, 13>}]} {
    %c0 = arith.constant 0 : index
    %c0_0 = arith.constant 0 : index
    %0 = vector.load %arg3[%c0, %c0_0] : memref<16x32xf32, #tpu.memory_space<vmem>>, vector<16x32xf32>
    %c0_1 = arith.constant 0 : index
    %c0_2 = arith.constant 0 : index
    %c0_3 = arith.constant 0 : index
    %1 = vector.load %arg2[%c0_1, %c0_2, %c0_3] : memref<1x8x16xf32, #tpu.memory_space<vmem>>, vector<1x8x13xf32>
    %2 = vector.shape_cast %1 : vector<1x8x13xf32> to vector<8x13xf32>
    %c0_4 = arith.constant 0 : index
    %c0_5 = arith.constant 0 : index
    %c1 = arith.constant 1 : index
    %3 = vector.load %arg2[%c0_4, %c0_5, %c1] : memref<1x8x16xf32, #tpu.memory_space<vmem>>, vector<1x8x13xf32>
    %4 = vector.shape_cast %3 : vector<1x8x13xf32> to vector<8x13xf32>
    %c0_6 = arith.constant 0 : index
    %c0_7 = arith.constant 0 : index
    %c2 = arith.constant 2 : index
    %5 = vector.load %arg2[%c0_6, %c0_7, %c2] : memref<1x8x16xf32, #tpu.memory_space<vmem>>, vector<1x8x13xf32>
    %6 = vector.shape_cast %5 : vector<1x8x13xf32> to vector<8x13xf32>
    %c0_8 = arith.constant 0 : index
    %c0_9 = arith.constant 0 : index
    %c3 = arith.constant 3 : index
    %7 = vector.load %arg2[%c0_8, %c0_9, %c3] : memref<1x8x16xf32, #tpu.memory_space<vmem>>, vector<1x8x13xf32>
    %8 = vector.shape_cast %7 : vector<1x8x13xf32> to vector<8x13xf32>
    %9 = tpu.concatenate %2, %4, %6, %8 in 0 : vector<8x13xf32>, vector<8x13xf32>, vector<8x13xf32>, vector<8x13xf32> -> vector<32x13xf32>
    %cst = arith.constant dense<0.000000e+00> : vector<16x13xf32>
    %10 = tpu.matmul %0, %9, %cst {dimension_numbers = #tpu.dot_dimension_numbers<[1], [0], [0], [1], [0, 0, 1, 1], [], []>} : vector<16x32xf32>, vector<32x13xf32>, vector<16x13xf32> -> vector<16x13xf32>
    %c0_10 = arith.constant 0 : index
    %c0_11 = arith.constant 0 : index
    %11 = vector.load %arg4[%c0_10, %c0_11] : memref<16x1xf32, #tpu.memory_space<vmem>>, vector<16x1xf32>
    %12 = vector.broadcast %11 : vector<16x1xf32> to vector<16x13xf32>
    %13 = arith.addf %10, %12 : vector<16x13xf32>
    %c0_12 = arith.constant 0 : index
    %c0_13 = arith.constant 0 : index
    %c0_14 = arith.constant 0 : index
    %14 = vector.load %arg5[%c0_12, %c0_13, %c0_14] : memref<1x16x13xf32, #tpu.memory_space<vmem>>, vector<1x16x13xf32>
    %15 = vector.shape_cast %14 : vector<1x16x13xf32> to vector<16x13xf32>
    %16 = vector.shape_cast %13 : vector<16x13xf32> to vector<1x16x13xf32>
    tpu.vector_store %arg5[%c0_12, %c0_13, %c0_14], %16 {strides = array<i32>} : memref<1x16x13xf32, #tpu.memory_space<vmem>>, vector<1x16x13xf32>,
    return
  }
  func.func @transform_0(%arg0: i32, %arg1: i32) -> (i32, i32, i32) {
    %c0_i32 = arith.constant 0 : i32
    %c0_i32_0 = arith.constant 0 : i32
    %c0_i32_1 = arith.constant 0 : i32
    return %arg0, %c0_i32, %c0_i32_0 : i32, i32, i32
  }
  func.func @transform_1(%arg0: i32, %arg1: i32) -> (i32, i32) {
    %c0_i32 = arith.constant 0 : i32
    %c0_i32_0 = arith.constant 0 : i32
    %c0_i32_1 = arith.constant 0 : i32
    return %c0_i32, %c0_i32_0 : i32, i32
  }
  func.func @transform_2(%arg0: i32, %arg1: i32) -> (i32, i32) {
    %c0_i32 = arith.constant 0 : i32
    %c0_i32_0 = arith.constant 0 : i32
    %c0_i32_1 = arith.constant 0 : i32
    return %c0_i32, %c0_i32_0 : i32, i32
  }
  func.func @transform_3(%arg0: i32, %arg1: i32) -> (i32, i32, i32) {
    %c0_i32 = arith.constant 0 : i32
    %c0_i32_0 = arith.constant 0 : i32
    return %arg0, %c0_i32, %arg1 : i32, i32, i32
  }
}

</mosaic_0001>

<llo_original>
// kernel: tpu_custom_call.1
$region0: #{tpu_custom_call.1}
  #allocation0 [shape = 'u32[]', space=smem, size = 0x4, offset = 0x4, fixed_abs, tag = 'smem constant byte address 0x4 - core index']
  #allocation1 [shape = 'u32[144,128]{1,0:T(1,128)}', space=vmem, size = 0x12000, scoped, tag = 'internal scratch']
  %s0 = inlined_call_operand.vmem [shape: f32[2,8,16], index: 0, kind: input, shape index: {}]
  %s1 = inlined_call_operand.hbm [shape: f32[16,32], index: 1, kind: input, shape index: {}]
  %s2 = inlined_call_operand.vmem [shape: f32[16,1], index: 2, kind: input, shape index: {}]
  %s3 = inlined_call_operand.vmem [shape: f32[2,16,13], index: 3, kind: output, shape index: {}]
  %s4 = sld [smem:[#allocation0]]
  $region49: #{tpu_custom_call.1} parent=0
    _
  %s6 = ssub.s32 1, %s4
  %s7 = scalar_select 0, %s6, %s4
  $region1: #{tpu_custom_call.1} parent=0
    #allocation2 [shape = 'u8[8192]{0}', space=vmem, size = 0x2000, scoped, tag = 'input window, operand 1, single buffered']
    #allocation3 [shape = 's32[2]{0}', space=sflag, size = 0x8, scoped, tag = 'scoped memory for tpu_custom_call.1']
    %8 = vsyncpa [#allocation3], 0
    loop: start=0, step=1, limit=4
    $region2: #{tpu_custom_call.1} parent=1 // loop_pre_header
      _
    $region3: #{tpu_custom_call.1} parent=1 // loop_header
      %s10 = sphi 0, %s14
      %p11 = scmp.ge.s32.totalorder %s10, 4
      %s17 = sphi 0, %s29
      %s18 = sphi 0, %s25
      %s19 = sphi 0, %s17
      %s20 = sphi 0, %s18
      %s21 = sphi 0, %s19
      %s22 = sphi 0, %s20
      %s32 = sphi 0, %s34
      %s35 = sphi 0, %s32
      %s36 = sphi 0, %s35
      %s52 = sphi 0, %s36
      %s56 = sphi 0, %s56
      %s58 = sphi 0, %s56
      %s59 = sphi 0, %s58
      %s73 = sphi 0, %s59
      %s77 = sphi 0, %s77
      %s79 = sphi 0, %s77
      %s80 = sphi 0, %s79
      %s94 = sphi 0, %s80
      %s102 = sphi 0, %s104
      %s105 = sphi 0, %s102
      %s106 = sphi 0, %s105
      %s122 = sphi 0, %s106
    $region4: #{tpu_custom_call.1} parent=1 // loop_header_branch
      %13 = sbr.rel (%p11) target = $region8
    $region5: #{tpu_custom_call.1} parent=1 // loop_body
      %s15 = ssub.s32 %s10, 1
      %s16 = ssub.s32 %s10, 2
      %s23 = sadd.s32 1, %s18
      %p24 = scmp.ge.s32.totalorder %s23, 1
      %s25 = scalar_select %p24, 0, %s23
      %s26 = sadd.s32 1, %s17
      %s27 = scalar_select %p24, %s26, %s17
      %p28 = scmp.ge.s32.totalorder %s27, 2
      %s29 = scalar_select %p28, 0, %s27
      %s30 = ssub.s32 %s17, %s29
      %p31 = scmp.eq.s32.totalorder %s30, 0
      %s33 = sadd.s32 %s32, 1
      %s34 = scalar_select %p31, %s32, %s33
      %p37 = pneg %p31
      %p38 = scmp.eq.s32.totalorder %s10, 1
      %p39 = por %p37, %p38
      %p40 = scmp.ne.s32.totalorder %s32, %s35
      %p41 = scmp.eq.s32.totalorder %s10, 0
      %p42 = por %p40, %p41
      %p43 = scmp.ne.s32.totalorder %s32, %s35
      %p44 = scmp.eq.s32.totalorder %s15, 1
      %p45 = por %p43, %p44
      %p46 = scmp.ne.s32.totalorder %s35, %s36
      %p47 = scmp.eq.s32.totalorder %s15, 0
      %p48 = por %p46, %p47
      %p49 = scmp.ne.s32.totalorder %s35, %s36
      %p50 = scmp.eq.s32.totalorder %s16, 1
      %p51 = por %p49, %p50
      %p53 = scmp.ne.s32.totalorder %s36, %s52
      %p54 = scmp.eq.s32.totalorder %s16, 0
      %p55 = por %p53, %p54
      %s57 = sadd.s32 %s56, 1
      %p60 = scmp.eq.s32.totalorder %s10, 1
      %p61 = scmp.ne.s32.totalorder %s56, %s58
      %p62 = scmp.eq.s32.totalorder %s10, 0
      %p63 = por %p61, %p62
      %p64 = scmp.ne.s32.totalorder %s56, %s58
      %p65 = scmp.eq.s32.totalorder %s15, 1
      %p66 = por %p64, %p65
      %p67 = scmp.ne.s32.totalorder %s58, %s59
      %p68 = scmp.eq.s32.totalorder %s15, 0
      %p69 = por %p67, %p68
      %p70 = scmp.ne.s32.totalorder %s58, %s59
      %p71 = scmp.eq.s32.totalorder %s16, 1
      %p72 = por %p70, %p71
      %p74 = scmp.ne.s32.totalorder %s59, %s73
      %p75 = scmp.eq.s32.totalorder %s16, 0
      %p76 = por %p74, %p75
      %s78 = sadd.s32 %s77, 1
      %p81 = scmp.eq.s32.totalorder %s10, 1
      %p82 = scmp.ne.s32.totalorder %s77, %s79
      %p83 = scmp.eq.s32.totalorder %s10, 0
      %p84 = por %p82, %p83
      %p85 = scmp.ne.s32.totalorder %s77, %s79
      %p86 = scmp.eq.s32.totalorder %s15, 1
      %p87 = por %p85, %p86
      %p88 = scmp.ne.s32.totalorder %s79, %s80
      %p89 = scmp.eq.s32.totalorder %s15, 0
      %p90 = por %p88, %p89
      %p91 = scmp.ne.s32.totalorder %s79, %s80
      %p92 = scmp.eq.s32.totalorder %s16, 1
      %p93 = por %p91, %p92
      %p95 = scmp.ne.s32.totalorder %s80, %s94
      %p96 = scmp.eq.s32.totalorder %s16, 0
      %p97 = por %p95, %p96
      %s98 = ssub.s32 %s17, %s29
      %s99 = ssub.s32 %s18, %s25
      %s100 = sor.u32 %s98, %s99
      %p101 = scmp.eq.s32.totalorder %s100, 0
      %s103 = sadd.s32 %s102, 1
      %s104 = scalar_select %p101, %s102, %s103
      %p107 = pneg %p101
      %p108 = scmp.eq.s32.totalorder %s10, 1
      %p109 = por %p107, %p108
      %p110 = scmp.ne.s32.totalorder %s102, %s105
      %p111 = scmp.eq.s32.totalorder %s10, 0
      %p112 = por %p110, %p111
      %p113 = scmp.ne.s32.totalorder %s102, %s105
      %p114 = scmp.eq.s32.totalorder %s15, 1
      %p115 = por %p113, %p114
      %p116 = scmp.ne.s32.totalorder %s105, %s106
      %p117 = scmp.eq.s32.totalorder %s15, 0
      %p118 = por %p116, %p117
      %p119 = scmp.ne.s32.totalorder %s105, %s106
      %p120 = scmp.eq.s32.totalorder %s16, 1
      %p121 = por %p119, %p120
      %p123 = scmp.ne.s32.totalorder %s106, %s122
      %p124 = scmp.eq.s32.totalorder %s16, 0
      %p125 = por %p123, %p124
      %p126 = scmp.le.s32.totalorder 1, %s10
      %p127 = scmp.lt.s32.totalorder %s10, 3
      %p128 = pnand %p126, %p127
      %p129 = pneg %p128
      // Predicated region
      $region9: #{tpu_custom_call.1} parent=5 // pred_check
        _
      $region10: #{tpu_custom_call.1} parent=5 // pred_check_branch
        %131 = sbr.rel (%p128) target = $region12
      $region11: #{tpu_custom_call.1} parent=5 // pred_region
        %s132 = ssub.s32 %s10, 1
        // Predicated region
        $region13: #{tpu_custom_call.1} parent=11 // pred_check
          %p133 = pneg %p69
        $region14: #{tpu_custom_call.1} parent=11 // pred_check_branch
          %135 = sbr.rel (%p133) target = $region16
        $region15: #{tpu_custom_call.1} parent=11 // pred_region
          %s137 = ssub.s32 256, 256
          %138 = vsyncadd [#allocation3], %s137
          %s139 = sshll.u32 [#allocation2], 4
          %s140 = int_to_ptr.vmem [resolvable:$true] %s139
          %145 = dma.hbm_to_vmem [thread:$0]  %s1, 256, %s140, [#allocation3], 128, 128, 8
        $region16: #{tpu_custom_call.1} parent=11 // pred_fallthru
          _
        // Predicated region
        $region17: #{tpu_custom_call.1} parent=11 // pred_check
          %p146 = pneg %p90
        $region18: #{tpu_custom_call.1} parent=11 // pred_check_branch
          %148 = sbr.rel (%p146) target = $region20
        $region19: #{tpu_custom_call.1} parent=11 // pred_region
          _
        $region20: #{tpu_custom_call.1} parent=11 // pred_fallthru
          _
      $region12: #{tpu_custom_call.1} parent=5 // pred_fallthru
        _
      %p149 = scmp.lt.s32.totalorder %s10, 2
      // Predicated region
      $region21: #{tpu_custom_call.1} parent=5 // pred_check
        %p150 = pneg %p149
      $region22: #{tpu_custom_call.1} parent=5 // pred_check_branch
        %152 = sbr.rel (%p150) target = $region24
      $region23: #{tpu_custom_call.1} parent=5 // pred_region
        // Predicated region
        $region25: #{tpu_custom_call.1} parent=23 // pred_check
          %p153 = pneg %p42
        $region26: #{tpu_custom_call.1} parent=23 // pred_check_branch
          %155 = sbr.rel (%p153) target = $region28
        $region27: #{tpu_custom_call.1} parent=23 // pred_region
          %p156 = scmp.lt.s32.totalorder %s17, 1
          %s157 = scalar_select %p156, %s17, 1
          %s158 = smul.addr %s157, 8
          %s159 = scalar_lea.vmem %s0, %s158
        $region28: #{tpu_custom_call.1} parent=23 // pred_fallthru
          _
      $region24: #{tpu_custom_call.1} parent=5 // pred_fallthru
        _
      %p160 = scmp.le.s32.totalorder 1, %s10
      %p161 = scmp.lt.s32.totalorder %s10, 3
      %p162 = pnand %p160, %p161
      %p163 = pneg %p162
      // Predicated region
      $region29: #{tpu_custom_call.1} parent=5 // pred_check
        _
      $region30: #{tpu_custom_call.1} parent=5 // pred_check_branch
        %165 = sbr.rel (%p162) target = $region32
      $region31: #{tpu_custom_call.1} parent=5 // pred_region
        %s166 = ssub.s32 %s10, 1
        // Predicated region
        $region33: #{tpu_custom_call.1} parent=31 // pred_check
          %p167 = pneg %p69
        $region34: #{tpu_custom_call.1} parent=31 // pred_check_branch
          %169 = sbr.rel (%p167) target = $region36
        $region35: #{tpu_custom_call.1} parent=31 // pred_region
          %170 = dma.done [#allocation3], 256
        $region36: #{tpu_custom_call.1} parent=31 // pred_fallthru
          _
        %p171 = scmp.lt.s32.totalorder %s19, 1
        %s172 = scalar_select %p171, %s19, 1
        %s173 = smul.addr %s172, 8
        %s174 = scalar_lea.vmem %s0, %s173
        %p175 = pneg %p48
        %p176 = pneg %p45
        %p177 = pneg %p69
        %p178 = pneg %p66
        %p179 = pneg %p90
        %p180 = pneg %p87
        %p181 = pneg %p118
        %p182 = pneg %p115
        %p183 = scmp.lt.s32.totalorder %s19, 1
        %s184 = scalar_select %p183, %s19, 1
        %p185 = scmp.lt.s32.totalorder %s20, 0
        %s186 = scalar_select %p185, %s20, 0
        %s187 = smul.addr %s184, 2
        %s188 = sadd.s32 %s186, %s187
        %s189 = smul.addr %s188, 8
        %s190 = scalar_lea.vmem %s3, %s189
        %p191 = scmp.lt.s32.totalorder %s19, 1
        %s192 = scalar_select %p191, %s19, 1
        %s193 = smul.addr %s192, 8
        %s194 = scalar_lea.vmem %s0, %s193
        %p195 = scmp.lt.s32.totalorder %s19, 1
        %s196 = scalar_select %p195, %s19, 1
        %p197 = scmp.lt.s32.totalorder %s20, 0
        %s198 = scalar_select %p197, %s20, 0
        %s199 = smul.addr %s196, 2
        %s200 = sadd.s32 %s198, %s199
        %s201 = smul.addr %s200, 8
        %s202 = scalar_lea.vmem %s3, %s201
        %v203 = vld [vmem:[#allocation2] sm:$0xff]
        %v204 = vld [vmem:[#allocation2 + $0x8] sm:$0xff]
        %v205 = vld [vmem:[%s194] sm:$0xff]
        %207 = vrot.lane.b32.xlu0 %v205, 127
        %v208 = vpop.permute.xlu0 %207
        %210 = vrot.lane.b32.xlu0 %v205, 126
        %v211 = vpop.permute.xlu0 %210
        %213 = vrot.lane.b32.xlu0 %v205, 125
        %v214 = vpop.permute.xlu0 %213
        %v216 = vld [vmem:[%s2] sm:$0xff]
        %v217 = vld [vmem:[%s2 + $0x8] sm:$0xff]
        %219 = vset.pattern.permute.xlu0 0
        %220 = vperm.xlu0 %219, %v216
        %v221 = vpop.permute.xlu0 %220
        %224 = vset.pattern.permute.xlu0 0
        %225 = vperm.xlu0 %224, %v217
        %v226 = vpop.permute.xlu0 %225
        %vm228 = vcmask 261120
        %v230 = vsel %vm228, %v203, 0
        %v233 = vsel %vm228, %v204, 0
        %235 = vmatprep.subr.mxu0 0.0
        %236 = vmatpush1.msra.mxu0 %v205
        %237 = vmatprep.subr.mxu0 0.0
        %238 = vmatpush1.msra.mxu0 %v208
        %239 = vmatprep.subr.mxu0 0.0
        %240 = vmatpush1.msra.mxu0 %v211
        %241 = vmatprep.subr.mxu0 0.0
        %242 = vmatpush1.msra.mxu0 %v214
        %243 = vmatprep.subr.mxu0 0.0
        %244 = vmatpush1.msra.mxu0 0.0
        %245 = vmatprep.subr.mxu0 0.0
        %246 = vmatpush1.msra.mxu0 0.0
        %247 = vmatprep.subr.mxu0 0.0
        %248 = vmatpush1.msra.mxu0 0.0
        %249 = vmatprep.subr.mxu0 0.0
        %250 = vmatpush1.msra.mxu0 0.0
        %251 = vmatprep.subr.mxu0 0.0
        %252 = vmatpush1.msra.mxu0 0.0
        %253 = vmatprep.subr.mxu0 0.0
        %254 = vmatpush1.msra.mxu0 0.0
        %255 = vmatprep.subr.mxu0 0.0
        %256 = vmatpush1.msra.mxu0 0.0
        %257 = vmatprep.subr.mxu0 0.0
        %258 = vmatpush1.msra.mxu0 0.0
        %259 = vmatprep.subr.mxu0 0.0
        %260 = vmatpush1.msra.mxu0 0.0
        %261 = vmatprep.subr.mxu0 0.0
        %262 = vmatpush1.msra.mxu0 0.0
        %263 = vmatprep.subr.mxu0 0.0
        %264 = vmatpush1.msra.mxu0 0.0
        %265 = vmatprep.subr.mxu0 0.0
        %266 = vmatpush1.msra.mxu0 0.0
        %267 = vmatprep.subr.mxu0 0.0
        %268 = vmatpush1.msra.mxu0 0.0
        %269 = vmatprep.subr.mxu0 0.0
        %270 = vmatpush1.msra.mxu0 0.0
        %271 = vmatprep.subr.mxu0 0.0
        %272 = vmatpush1.msra.mxu0 0.0
        %273 = vmatprep.subr.mxu0 0.0
        %274 = vmatpush1.msra.mxu0 0.0
        %275 = vmatprep.subr.mxu0 0.0
        %276 = vmatpush1.msra.mxu0 0.0
        %277 = vmatprep.subr.mxu0 0.0
        %278 = vmatpush1.msra.mxu0 0.0
        %279 = vmatprep.subr.mxu0 0.0
        %280 = vmatpush1.msra.mxu0 0.0
        %281 = vmatprep.subr.mxu0 0.0
        %282 = vmatpush1.msra.mxu0 0.0
        %283 = vmatprep.subr.mxu0 0.0
        %284 = vmatpush1.msra.mxu0 0.0
        %285 = vmatprep.subr.mxu0 0.0
        %286 = vmatpush1.msra.mxu0 0.0
        %287 = vmatprep.subr.mxu0 0.0
        %288 = vmatpush1.msra.mxu0 0.0
        %289 = vmatprep.subr.mxu0 0.0
        %290 = vmatpush1.msra.mxu0 0.0
        %291 = vmatprep.subr.mxu0 0.0
        %292 = vmatpush1.msra.mxu0 0.0
        %293 = vmatprep.subr.mxu0 0.0
        %294 = vmatpush1.msra.mxu0 0.0
        %295 = vmatprep.subr.mxu0 0.0
        %296 = vmatpush1.msra.mxu0 0.0
        %297 = vmatprep.subr.mxu0 0.0
        %298 = vmatpush1.msra.mxu0 0.0
        %299 = vmatprep.mubr.f32.mxu0 0.0
        %300 = vmatmul.mubr.f32.gmra.mrb[0].mxu0 %v230
        %v301 = vpop.f32.mrb[0].mxu0
        %v302 = vadd.f32 %v221, %v301
        %v303 = vpop.f32.mrb[0].mxu0
        %304 = vmatprep.mubr.f32.mxu0 0.0
        %305 = vmatmul.mubr.f32.gmra.mrb[0].mxu0 %v233
        %v306 = vpop.f32.mrb[0].mxu0
        %v307 = vadd.f32 %v226, %v306
        %v308 = vpop.f32.mrb[0].mxu0
        %309 = vdwg.mxu0
        %vm310 = vcmask 105472
        %311 = vst.msk [vmem:[%s202] sm:$0xff] %vm310, %v302
        %312 = vst.msk [vmem:[%s202 + $0x8] sm:$0xff] %vm310, %v307
        %p313 = scmp.lt.s32.totalorder %s19, 1
        %s314 = scalar_select %p313, %s19, 1
        %p315 = scmp.lt.s32.totalorder %s20, 0
        %s316 = scalar_select %p315, %s20, 0
        %s317 = smul.addr %s314, 2
        %s318 = sadd.s32 %s316, %s317
        %s319 = smul.addr %s318, 8
        %s320 = scalar_lea.vmem %s3, %s319
        // Predicated region
        $region37: #{tpu_custom_call.1} parent=31 // pred_check
          %p321 = pneg %p115
        $region38: #{tpu_custom_call.1} parent=31 // pred_check_branch
          %323 = sbr.rel (%p321) target = $region40
        $region39: #{tpu_custom_call.1} parent=31 // pred_region
          _
        $region40: #{tpu_custom_call.1} parent=31 // pred_fallthru
          _
      $region32: #{tpu_custom_call.1} parent=5 // pred_fallthru
        _
      %p324 = scmp.le.s32.totalorder 2, %s10
      // Predicated region
      $region41: #{tpu_custom_call.1} parent=5 // pred_check
        %p325 = pneg %p324
      $region42: #{tpu_custom_call.1} parent=5 // pred_check_branch
        %327 = sbr.rel (%p325) target = $region44
      $region43: #{tpu_custom_call.1} parent=5 // pred_region
        %s328 = ssub.s32 %s10, 2
        // Predicated region
        $region45: #{tpu_custom_call.1} parent=43 // pred_check
          %p329 = pneg %p121
        $region46: #{tpu_custom_call.1} parent=43 // pred_check_branch
          %331 = sbr.rel (%p329) target = $region48
        $region47: #{tpu_custom_call.1} parent=43 // pred_region
          %p332 = scmp.lt.s32.totalorder %s21, 1
          %s333 = scalar_select %p332, %s21, 1
          %p334 = scmp.lt.s32.totalorder %s22, 0
          %s335 = scalar_select %p334, %s22, 0
          %s336 = smul.addr %s333, 2
          %s337 = sadd.s32 %s335, %s336
          %s338 = smul.addr %s337, 8
          %s339 = scalar_lea.vmem %s3, %s338
        $region48: #{tpu_custom_call.1} parent=43 // pred_fallthru
          _
      $region44: #{tpu_custom_call.1} parent=5 // pred_fallthru
        _
    $region6: #{tpu_custom_call.1} parent=1 // loop_footer
      %s14 = sadd.s32 1, %s10
    $region7: #{tpu_custom_call.1} parent=1 // loop_footer_branch
      %9 = sbr.rel target = $region3
    $region8: #{tpu_custom_call.1} parent=1 // loop_exit
      _
    %340 = vsyncpa [#allocation3], 1
    %s341 = scalar_lea.sflag [#allocation3], 1
    %342 = vsyncpa %s341, 1

</llo_original>
